<compile_context>
chip_gen: v5e
topology: v5e:2x2
jax: 0.10.0
libtpu: 0.0.40
codegen_flags: <defaults>
</compile_context>

<pallas_src>
import functools

import jax
import jax.numpy as jnp
from jax import lax
from jax.experimental import pallas as pl
from jax.experimental.pallas import tpu as pltpu

_LANES = 128
_SMALL_SIZE_THRESHOLD = 1 << 20   # elements per stream; below this, fused jnp wins


def _default_max_tile_rows() -> int:
    """Largest tile (rows of 128 lanes) whose double-buffered footprint
    (2 streams x 2 buffers x rows x 512 B) fits the generation's scoped-VMEM
    default without raising vmem_limit_bytes."""
    try:
        kind = jax.devices()[0].device_kind.lower()
    except Exception:
        return 6144
    if any(g in kind for g in ("v2", "v3", "v4", "v5")):
        return 6144           # ~12.6 MiB double-buffered (v5e scoped default 16 MiB)
    return 12288              # ~25 MiB double-buffered (v6e/v7x scoped default 32 MiB)


def _ssd_ref(a, b):
    """Fused-XLA sum of squared differences with f32 accumulation."""
    d = a.astype(jnp.float32) - b.astype(jnp.float32)
    return jnp.sum(d * d)


def _ssd_tile_kernel(a_ref, b_ref, out_ref, *, tile_rows: int, rows: int):
    """Per-tile partial sum of squared differences.

    Writes a lane-dense (1, 128) sublane-reduced partial; the cross-lane
    reduce and the 1/N + loss-weight scaling happen once in the wrapper.
    Tiles are fully independent -> grid axis can be 'parallel' (v7x megacore).
    """
    d = a_ref[...].astype(jnp.float32) - b_ref[...].astype(jnp.float32)
    sq = d * d
    if rows % tile_rows != 0:
        # Ragged last tile: rows past `rows` hold unspecified data; mask them.
        valid = rows - pl.program_id(0) * tile_rows
        row_idx = lax.broadcasted_iota(jnp.int32, sq.shape, 0)
        sq = jnp.where(row_idx < valid, sq, 0.0)
    out_ref[...] = jnp.sum(sq, axis=0, keepdims=True)


def _sum_sq_diff(a, b, *, small_size_threshold, max_tile_rows, force_pallas):
    """sum((a - b)**2) over all elements (f32). Pallas only for large streams."""
    if a.shape != b.shape:
        raise ValueError(f"prediction/target shape mismatch: {a.shape} vs {b.shape}")
    n = a.size
    rows = n // _LANES
    if rows == 0 or (n < small_size_threshold and not force_pallas):
        return _ssd_ref(a, b)

    flat_a = a.reshape(-1)          # contiguous reshape: free (bitcast)
    flat_b = b.reshape(-1)
    head = rows * _LANES
    # Zero-copy lane-dense head when n is a multiple of 128; otherwise one
    # prefix slice (the only copy on this path — no full-array jnp.pad).
    a2 = (flat_a if head == n else flat_a[:head]).reshape(rows, _LANES)
    b2 = (flat_b if head == n else flat_b[:head]).reshape(rows, _LANES)

    max_tile_rows = max(8, (int(max_tile_rows) // 8) * 8)   # sublane alignment
    if rows <= max_tile_rows:
        tile_rows = rows            # single full-extent tile (any row count OK)
    else:
        tile_rows = max_tile_rows   # multiple of 8 by construction
    n_tiles = (rows + tile_rows - 1) // tile_rows

    kernel = functools.partial(_ssd_tile_kernel, tile_rows=tile_rows, rows=rows)
    in_spec = pl.BlockSpec((tile_rows, _LANES), lambda i: (i, 0))

    partials = pl.pallas_call(
        kernel,
        out_shape=jax.ShapeDtypeStruct((n_tiles, _LANES), jnp.float32),
        grid_spec=pltpu.PrefetchScalarGridSpec(
            num_scalar_prefetch=0,
            grid=(n_tiles,),
            in_specs=[in_spec, in_spec],
            out_specs=pl.BlockSpec((1, _LANES), lambda i: (i, 0)),
        ),
        compiler_params=pltpu.CompilerParams(
            # Independent per-tile partial outputs -> both TensorCores on v7x.
            dimension_semantics=("parallel",),
        ),
    )(a2, b2)

    total = jnp.sum(partials)                       # tiny cross-tile/lane reduce
    if head != n:                                   # <128-element ragged tail
        total = total + _ssd_ref(flat_a[head:], flat_b[head:])
    return total


def tryon_loss(predictions, targets,
               transform_weight: float = 1.0, blend_weight: float = 0.5, *,
               small_size_threshold: int = _SMALL_SIZE_THRESHOLD,
               force_pallas: bool = False,
               max_tile_rows=None):
    """JAX/Pallas equivalent of TryOnLoss.forward. Returns a scalar f32."""
    pt = predictions["transform_params"]
    pb = predictions["blend_weight"]
    tt = targets["target_transform"]
    tb = targets["target_blend_weight"]
    if max_tile_rows is None:
        max_tile_rows = _default_max_tile_rows()

    ssd_t = _sum_sq_diff(pt, tt, small_size_threshold=small_size_threshold,
                         max_tile_rows=max_tile_rows, force_pallas=force_pallas)
    ssd_b = _sum_sq_diff(pb, tb, small_size_threshold=small_size_threshold,
                         max_tile_rows=max_tile_rows, force_pallas=force_pallas)

    # MSE denominators = true element counts; weights applied once at the end.
    return (float(transform_weight) / pt.size) * ssd_t \
         + (float(blend_weight) / pb.size) * ssd_b


if __name__ == "__main__":
    key = jax.random.PRNGKey(0)

    def make_inputs(batch, params=6):
        k1, k2, k3, k4 = jax.random.split(jax.random.fold_in(key, batch), 4)
        preds = {
            "transform_params": jax.random.normal(k1, (batch, params), jnp.float32),
            "blend_weight": jax.random.uniform(k2, (batch, 1), jnp.float32),
        }
        tgts = {
            "target_transform": jax.random.normal(k3, (batch, params), jnp.float32),
            "target_blend_weight": jax.random.uniform(k4, (batch, 1), jnp.float32),
        }
        return preds, tgts

    def ref_loss(preds, tgts, tw=1.0, bw=0.5):
        lt = jnp.mean((preds["transform_params"] - tgts["target_transform"]) ** 2)
        lb = jnp.mean((preds["blend_weight"] - tgts["target_blend_weight"]) ** 2)
        return tw * lt + bw * lb

    # 1) Module-consistent tiny shapes (B=2): auto-dispatch -> fused jnp path.
    preds_s, tgts_s = make_inputs(2)
    loss_s = jax.block_until_ready(tryon_loss(preds_s, tgts_s, 1.0, 0.5))
    assert jnp.allclose(loss_s, ref_loss(preds_s, tgts_s), rtol=1e-4, atol=1e-6), (
        loss_s, ref_loss(preds_s, tgts_s))

    # 2) Pallas kernel: single full-extent tile per stream, zero-copy packing
    #    (both element counts are multiples of 128).
    preds_m, tgts_m = make_inputs(512)
    loss_m = jax.block_until_ready(
        tryon_loss(preds_m, tgts_m, 1.0, 0.5, force_pallas=True))
    assert jnp.allclose(loss_m, ref_loss(preds_m, tgts_m), rtol=1e-4, atol=1e-6), (
        loss_m, ref_loss(preds_m, tgts_m))

    # 3) Pallas kernel: multi-tile parallel grid with a ragged (masked) last
    #    tile plus a <128-element jnp tail (B=500 -> 23 rows, 56-element tail).
    preds_r, tgts_r = make_inputs(500)
    loss_r = jax.block_until_ready(
        tryon_loss(preds_r, tgts_r, 1.0, 0.5, force_pallas=True, max_tile_rows=8))
    assert jnp.allclose(loss_r, ref_loss(preds_r, tgts_r), rtol=1e-4, atol=1e-6), (
        loss_r, ref_loss(preds_r, tgts_r))

    # 4) Moderate batch under the raised threshold stays on the fused jnp path.
    preds_d, tgts_d = make_inputs(2048)
    loss_d = jax.block_until_ready(tryon_loss(preds_d, tgts_d, 1.0, 0.5))
    assert jnp.allclose(loss_d, ref_loss(preds_d, tgts_d), rtol=1e-4, atol=1e-6), (
        loss_d, ref_loss(preds_d, tgts_d))

    print("KERNEL_OK")
</pallas_src>

<mosaic_0001>
module attributes {stable_mosaic.version = 11 : i64} {
  func.func @_ssd_tile_kernel(%arg0: i32, %arg1: memref<24x128xf32, #tpu.memory_space<vmem>>, %arg2: memref<24x128xf32, #tpu.memory_space<vmem>>, %arg3: memref<1x128xf32, #tpu.memory_space<vmem>>) attributes {dimension_semantics = [#tpu.dimension_semantics<parallel>], iteration_bounds = array<i64: 1>, scalar_prefetch = 0 : i64, scratch_operands = 0 : i64, tpu.core_type = #tpu.core_type<tc>, window_params = [{transform_indices = @transform_0, window_bounds = array<i64: 24, 128>}, {transform_indices = @transform_1, window_bounds = array<i64: 24, 128>}, {transform_indices = @transform_2, window_bounds = array<i64: 1, 128>}]} {
    %c0 = arith.constant 0 : index
    %c0_0 = arith.constant 0 : index
    %0 = vector.load %arg1[%c0, %c0_0] : memref<24x128xf32, #tpu.memory_space<vmem>>, vector<24x128xf32>
    %c0_1 = arith.constant 0 : index
    %c0_2 = arith.constant 0 : index
    %1 = vector.load %arg2[%c0_1, %c0_2] : memref<24x128xf32, #tpu.memory_space<vmem>>, vector<24x128xf32>
    %2 = arith.subf %0, %1 : vector<24x128xf32>
    %3 = arith.mulf %2, %2 : vector<24x128xf32>
    %cst = arith.constant dense<0.000000e+00> : vector<128xf32>
    %4 = vector.multi_reduction <add>, %3, %cst [0] : vector<24x128xf32> to vector<128xf32>
    %5 = vector.shape_cast %4 : vector<128xf32> to vector<1x128xf32>
    %c0_3 = arith.constant 0 : index
    %c0_4 = arith.constant 0 : index
    %6 = vector.load %arg3[%c0_3, %c0_4] : memref<1x128xf32, #tpu.memory_space<vmem>>, vector<1x128xf32>
    tpu.vector_store %arg3[%c0_3, %c0_4], %5 {strides = array<i32>} : memref<1x128xf32, #tpu.memory_space<vmem>>, vector<1x128xf32>,
    return
  }
  func.func @transform_0(%arg0: i32) -> (i32, i32) {
    %c0_i32 = arith.constant 0 : i32
    %c0_i32_0 = arith.constant 0 : i32
    return %arg0, %c0_i32 : i32, i32
  }
  func.func @transform_1(%arg0: i32) -> (i32, i32) {
    %c0_i32 = arith.constant 0 : i32
    %c0_i32_0 = arith.constant 0 : i32
    return %arg0, %c0_i32 : i32, i32
  }
  func.func @transform_2(%arg0: i32) -> (i32, i32) {
    %c0_i32 = arith.constant 0 : i32
    %c0_i32_0 = arith.constant 0 : i32
    return %arg0, %c0_i32 : i32, i32
  }
}

</mosaic_0001>

<llo_original>
// kernel: tpu_custom_call.1
$region0: #{tpu_custom_call.1}
  #allocation0 [shape = 'u32[]', space=smem, size = 0x4, offset = 0x4, fixed_abs, tag = 'smem constant byte address 0x4 - core index']
  #allocation1 [shape = 'u32[72,128]{1,0:T(1,128)}', space=vmem, size = 0x9000, scoped, tag = 'internal scratch']
  %s0 = inlined_call_operand.hbm [shape: f32[24,128], index: 0, kind: input, shape index: {}]
  %s1 = inlined_call_operand.hbm [shape: f32[24,128], index: 1, kind: input, shape index: {}]
  %s2 = inlined_call_operand.hbm [shape: f32[1,128], index: 2, kind: output, shape index: {}]
  %s3 = sld [smem:[#allocation0]]
  $region26: #{tpu_custom_call.1} parent=0
    _
  %s5 = ssub.s32 1, %s3
  %s6 = scalar_select 0, %s5, %s3
  $region1: #{tpu_custom_call.1} parent=0
    #allocation2 [shape = 'u8[12288]{0}', space=vmem, size = 0x3000, scoped, tag = 'input window, operand 0, single buffered']
    #allocation3 [shape = 's32[1]{0}', space=sflag, size = 0x4, scoped, tag = 'scoped memory for tpu_custom_call.1']
    #allocation4 [shape = 's32[1]{0}', space=sflag, size = 0x4, scoped, tag = 'scoped memory for tpu_custom_call.1']
    #allocation5 [shape = 'u8[12288]{0}', space=vmem, size = 0x3000, scoped, tag = 'input window, operand 1, single buffered']
    #allocation6 [shape = 's32[1]{0}', space=sflag, size = 0x4, scoped, tag = 'scoped memory for tpu_custom_call.1']
    #allocation7 [shape = 'u8[512]{0}', space=vmem, size = 0x400, scoped, tag = 'output window, operand 0, single buffered']
    %7 = vsyncpa [#allocation3], 0
    %8 = vsyncpa [#allocation6], 0
    %9 = vsyncpa [#allocation4], 0
    // Predicated region
    $region2: #{tpu_custom_call.1} parent=1 // pred_check
      _
    $region3: #{tpu_custom_call.1} parent=1 // pred_check_branch
      %11 = sbr.rel (0) target = $region5
    $region4: #{tpu_custom_call.1} parent=1 // pred_region
      %13 = vsyncadd [#allocation3], 0
      %s14 = sshll.u32 %s0, 4
      %s15 = int_to_ptr.hbm [resolvable:$true] %s14
      %s16 = sshll.u32 [#allocation2], 4
      %s17 = int_to_ptr.vmem [resolvable:$true] %s16
      %22 = dma.hbm_to_vmem [thread:$0]  %s15, 384, %s17, [#allocation3], 128, 128, 8
    $region5: #{tpu_custom_call.1} parent=1 // pred_fallthru
      _
    // Predicated region
    $region6: #{tpu_custom_call.1} parent=1 // pred_check
      _
    $region7: #{tpu_custom_call.1} parent=1 // pred_check_branch
      %24 = sbr.rel (0) target = $region9
    $region8: #{tpu_custom_call.1} parent=1 // pred_region
      %26 = vsyncadd [#allocation6], 0
      %s27 = sshll.u32 %s1, 4
      %s28 = int_to_ptr.hbm [resolvable:$true] %s27
      %s29 = sshll.u32 [#allocation5], 4
      %s30 = int_to_ptr.vmem [resolvable:$true] %s29
      %35 = dma.hbm_to_vmem [thread:$0]  %s28, 384, %s30, [#allocation6], 128, 128, 8
    $region9: #{tpu_custom_call.1} parent=1 // pred_fallthru
      _
    // Predicated region
    $region10: #{tpu_custom_call.1} parent=1 // pred_check
      _
    $region11: #{tpu_custom_call.1} parent=1 // pred_check_branch
      %37 = sbr.rel (0) target = $region13
    $region12: #{tpu_custom_call.1} parent=1 // pred_region
      %39 = dma.done [#allocation3], 384
    $region13: #{tpu_custom_call.1} parent=1 // pred_fallthru
      _
    // Predicated region
    $region14: #{tpu_custom_call.1} parent=1 // pred_check
      _
    $region15: #{tpu_custom_call.1} parent=1 // pred_check_branch
      %41 = sbr.rel (0) target = $region17
    $region16: #{tpu_custom_call.1} parent=1 // pred_region
      %43 = dma.done [#allocation6], 384
    $region17: #{tpu_custom_call.1} parent=1 // pred_fallthru
      _
    %v44 = vld [vmem:[#allocation2] sm:$0xff]
    %v45 = vld [vmem:[#allocation2 + $0x8] sm:$0xff]
    %v46 = vld [vmem:[#allocation2 + $0x10] sm:$0xff]
    %v47 = vld [vmem:[#allocation5] sm:$0xff]
    %v48 = vld [vmem:[#allocation5 + $0x8] sm:$0xff]
    %v49 = vld [vmem:[#allocation5 + $0x10] sm:$0xff]
    %v50 = vsub.f32 %v44, %v47
    %v51 = vsub.f32 %v45, %v48
    %v52 = vsub.f32 %v46, %v49
    %v53 = vmul.f32 %v50, %v50
    %v54 = vmul.f32 %v51, %v51
    %v55 = vmul.f32 %v52, %v52
    %v56 = vadd.f32 %v53, %v54
    %v57 = vadd.f32 %v56, %v55
    %v58 = vrot.slane %v57, 4
    %v59 = vadd.f32 %v57, %v58
    %v60 = vrot.slane %v59, 2
    %v61 = vadd.f32 %v59, %v60
    %v62 = vrot.slane %v61, 1
    %v63 = vadd.f32 %v61, %v62
    %64 = vst [vmem:[#allocation7] sm:$0x1] %v63
    // Predicated region
    $region18: #{tpu_custom_call.1} parent=1 // pred_check
      _
    $region19: #{tpu_custom_call.1} parent=1 // pred_check_branch
      %66 = sbr.rel (0) target = $region21
    $region20: #{tpu_custom_call.1} parent=1 // pred_region
      %68 = vsyncadd [#allocation4], 0
      %s70 = sshll.u32 [#allocation7], 4
      %s71 = int_to_ptr.vmem [resolvable:$true] %s70
      %s72 = sshll.u32 %s2, 4
      %s73 = int_to_ptr.hbm [resolvable:$true] %s72
      %75 = dma.vmem_to_hbm [thread:$0]  %s71, 16, %s73, [#allocation4]
    $region21: #{tpu_custom_call.1} parent=1 // pred_fallthru
      _
    // Predicated region
    $region22: #{tpu_custom_call.1} parent=1 // pred_check
      _
    $region23: #{tpu_custom_call.1} parent=1 // pred_check_branch
      %77 = sbr.rel (0) target = $region25
    $region24: #{tpu_custom_call.1} parent=1 // pred_region
      %79 = dma.done [#allocation4], 16
    $region25: #{tpu_custom_call.1} parent=1 // pred_fallthru
      _
    %80 = vsyncpa [#allocation3], 1
    %81 = vsyncpa [#allocation6], 1
    %82 = vsyncpa [#allocation4], 1

</llo_original>
